<compile_context>
chip_gen: v6e
topology: v6e:2x2x1
jax: 0.10.0
libtpu: 0.0.40
codegen_flags: <defaults>
</compile_context>

<pallas_src>
import functools

import jax
import jax.numpy as jnp
from jax.experimental import pallas as pl
from jax.experimental.pallas import tpu as pltpu


def _round_up(x, m):
    return ((x + m - 1) // m) * m


# ---------------------------------------------------------------------------
# Kernel 1: row-tiled projection + per-node attention scalars.
# ---------------------------------------------------------------------------
def project_kernel(h_ref, w_ref, b_ref, a_src_ref, a_dst_ref, a_bias_ref,
                   wh_ref, s_src_ref, s_dst_ref):
    # bf16 x bf16 -> f32 accumulate on the MXU.
    wh = jnp.dot(h_ref[...], w_ref[...],
                 preferred_element_type=jnp.float32) + b_ref[...]
    wh_ref[...] = wh.astype(wh_ref.dtype)  # bf16 value matrix for attn @ Wh

    # Width-1 matvec on the VPU (mul + lane reduce); a_bias folded here
    # (SMEM scalar, no padded VMEM block).
    s_src_ref[...] = (jnp.sum(wh * a_src_ref[...], axis=-1, keepdims=True)
                      + a_bias_ref[0, 0])

    # Lane-dense [1, TQ] result: contract the feature axis of a_dst with Wh.
    s_dst_ref[...] = jax.lax.dot_general(
        a_dst_ref[...], wh, (((1,), (1,)), ((), ())),
        preferred_element_type=jnp.float32)


# ---------------------------------------------------------------------------
# Kernel 2: flash-style masked softmax + aggregation over key tiles.
# ---------------------------------------------------------------------------
def attn_kernel(s_src_ref, s_dst_ref, bias_ref, wh_ref, out_ref,
                m_sc, l_sc, acc_sc, *, alpha):
    k = pl.program_id(1)

    @pl.when(k == 0)
    def _():
        m_sc[...] = jnp.full_like(m_sc, -jnp.inf)
        l_sc[...] = jnp.zeros_like(l_sc)
        acc_sc[...] = jnp.zeros_like(acc_sc)

    # e[i, j] = LeakyReLU(s_src[i] + s_dst[j]) + bias[i, j]
    # (a_bias already inside s_src; bias is 0 for edges, -9e15 otherwise).
    s = s_src_ref[...] + s_dst_ref[...]                       # [TQ, TK] f32
    s = jnp.where(s > 0, s, alpha * s)                        # LeakyReLU(alpha)
    e = s + bias_ref[...].astype(jnp.float32)                 # additive mask

    # Online softmax update; running max / denominator stay in f32.
    m_prev = m_sc[...]
    m_new = jnp.maximum(m_prev, jnp.max(e, axis=1, keepdims=True))
    corr = jnp.exp(m_prev - m_new)
    p = jnp.exp(e - m_new)                                    # unnormalized
    l_sc[...] = corr * l_sc[...] + jnp.sum(p, axis=1, keepdims=True)
    # Deferred normalization: matmul the raw probs (bf16) and scale by 1/l
    # after the reduction finishes (TQxFp multiply instead of TQxTK).
    acc_sc[...] = corr * acc_sc[...] + jnp.dot(
        p.astype(jnp.bfloat16), wh_ref[...],
        preferred_element_type=jnp.float32)
    m_sc[...] = m_new

    # TODO(synk): F.dropout on the attention matrix is omitted (eval mode).

    @pl.when(k == pl.num_programs(1) - 1)
    def _():
        inv = pl.reciprocal(l_sc[...], approx=True)           # EUP, ~free slot
        hp = acc_sc[...] * inv
        # concat=True branch: ELU.  Clamp exp arg so the untaken branch of the
        # select can never overflow to inf.
        out_ref[...] = jnp.where(hp > 0, hp,
                                 jnp.exp(jnp.minimum(hp, 0.0)) - 1.0)


def gat_forward(h, W, b, a_w, a_b, adj, *, alpha=0.2):
    """h: [N, Fin]  W: [Fin, Fout]  b: [Fout]  a_w: [2*Fout]  a_b: scalar
       adj: [N, N] dense adjacency (entries > 0 mark edges)."""
    N, Fin = h.shape
    Fout = W.shape[1]
    f32, bf16 = jnp.float32, jnp.bfloat16

    # Lane-dense feature padding; N padded to a multiple of 256 so TQ=256
    # always divides (no fallback to 128-tall tiles / doubled grid steps).
    Fp = _round_up(Fout, 128)
    NP = _round_up(max(N, 1), 256)
    TQ = 256
    TK = 512 if NP % 512 == 0 else 256

    h_p = jnp.zeros((NP, Fin), bf16).at[:N, :].set(h.astype(bf16))
    W_p = jnp.zeros((Fin, Fp), bf16).at[:, :Fout].set(W.astype(bf16))
    b_p = jnp.zeros((1, Fp), f32).at[0, :Fout].set(b.astype(f32))
    a_src = jnp.zeros((1, Fp), f32).at[0, :Fout].set(a_w[:Fout].astype(f32))
    a_dst = jnp.zeros((1, Fp), f32).at[0, :Fout].set(a_w[Fout:].astype(f32))
    a_bias = jnp.asarray(a_b, f32).reshape(1, 1)

    # Additive edge mask: 0 for edges, -9e15 elsewhere (incl. all padding),
    # streamed as bf16 (no int8 unpack + compare + select on the VALU path).
    bias_p = jnp.full((NP, NP), -9.0e15, f32)
    bias_p = bias_p.at[:N, :N].set(jnp.where(adj > 0, 0.0, -9.0e15))
    bias_p = bias_p.astype(bf16)

    grid_rows = NP // TQ
    grid_keys = NP // TK

    # Explicit scoped-VMEM budgets computed from the (N-independent) tile
    # sizes (x2 for double-buffered I/O already included), with headroom.
    k1_bytes = 2 * (TQ * Fin * 2 + Fin * Fp * 2 + 3 * Fp * 4
                    + TQ * Fp * 2 + TQ * 4 + TQ * 4)
    k2_bytes = (2 * (TQ * 4 + TK * 4 + TQ * TK * 2 + TK * Fp * 2 + TQ * Fp * 4)
                + 2 * TQ * 4 + TQ * Fp * 4)

    def _limit(raw_bytes):
        return int(max(16 * 2**20, min(48 * 2**20, 4 * raw_bytes)))

    # --- Kernel 1: projection + attention scalars (row-tiled) ----------------
    wh_bf16, s_src_c, s_dst_r = pl.pallas_call(
        project_kernel,
        grid=(grid_rows,),
        in_specs=[
            pl.BlockSpec((TQ, Fin), lambda i: (i, 0)),              # h tile (bf16)
            pl.BlockSpec((Fin, Fp), lambda i: (0, 0)),              # W (resident)
            pl.BlockSpec((1, Fp), lambda i: (0, 0)),                # b
            pl.BlockSpec((1, Fp), lambda i: (0, 0)),                # a_src
            pl.BlockSpec((1, Fp), lambda i: (0, 0)),                # a_dst
            pl.BlockSpec(memory_space=pltpu.MemorySpace.SMEM),      # a_bias scalar
        ],
        out_specs=(
            pl.BlockSpec((TQ, Fp), lambda i: (i, 0)),               # Wh (bf16)
            pl.BlockSpec((TQ, 1), lambda i: (i, 0)),                # s_src
            pl.BlockSpec((1, TQ), lambda i: (0, i)),                # s_dst
        ),
        out_shape=(
            jax.ShapeDtypeStruct((NP, Fp), bf16),
            jax.ShapeDtypeStruct((NP, 1), f32),
            jax.ShapeDtypeStruct((1, NP), f32),
        ),
        compiler_params=pltpu.CompilerParams(
            dimension_semantics=("parallel",),
            vmem_limit_bytes=_limit(k1_bytes)),
    )(h_p, W_p, b_p, a_src, a_dst, a_bias)

    # --- Kernel 2: key-tiled online-softmax attention + aggregation ----------
    out_p = pl.pallas_call(
        functools.partial(attn_kernel, alpha=alpha),
        grid=(grid_rows, grid_keys),
        in_specs=[
            pl.BlockSpec((TQ, 1), lambda i, k: (i, 0)),     # s_src row-tile
            pl.BlockSpec((1, TK), lambda i, k: (0, k)),     # s_dst key-tile
            pl.BlockSpec((TQ, TK), lambda i, k: (i, k)),    # bf16 mask bias tile
            pl.BlockSpec((TK, Fp), lambda i, k: (k, 0)),    # Wh key-tile (bf16)
        ],
        out_specs=pl.BlockSpec((TQ, Fp), lambda i, k: (i, 0)),
        out_shape=jax.ShapeDtypeStruct((NP, Fp), f32),
        scratch_shapes=[
            pltpu.VMEM((TQ, 1), f32),    # running max
            pltpu.VMEM((TQ, 1), f32),    # running denom
            pltpu.VMEM((TQ, Fp), f32),   # unnormalized accumulator
        ],
        compiler_params=pltpu.CompilerParams(
            dimension_semantics=("parallel", "arbitrary"),
            vmem_limit_bytes=_limit(k2_bytes)),
    )(s_src_c, s_dst_r, bias_p, wh_bf16)

    return out_p[:N, :Fout]


def gat_reference(h, W, b, a_w, a_b, adj, alpha=0.2):
    """Pure-JAX f32 reference mirroring the PyTorch module (eval mode)."""
    Wh = h @ W + b
    Fout = Wh.shape[1]
    s1 = Wh @ a_w[:Fout]
    s2 = Wh @ a_w[Fout:]
    e = s1[:, None] + s2[None, :] + a_b
    e = jnp.where(e > 0, e, alpha * e)
    e = jnp.where(adj > 0, e, -9.0e15)
    attn = jax.nn.softmax(e, axis=1)
    hp = attn @ Wh
    return jnp.where(hp > 0, hp, jnp.exp(jnp.minimum(hp, 0.0)) - 1.0)


if __name__ == "__main__":
    # Small, module-consistent shapes: N=8 nodes, in_features=16, out_features=32.
    N, FIN, FOUT = 8, 16, 32
    ALPHA = 0.2            # LeakyReLU negative slope
    # dropout = 0.6 is unused in eval mode.

    key = jax.random.PRNGKey(0)
    k_h, k_w, k_b, k_aw, k_ab = jax.random.split(key, 5)

    # Node features.
    h = jax.random.normal(k_h, (N, FIN), dtype=jnp.float32)

    # Deterministic nn.Linear-style init (uniform(-1/sqrt(fan_in), 1/sqrt(fan_in))).
    lim1 = 1.0 / (FIN ** 0.5)
    W = jax.random.uniform(k_w, (FIN, FOUT), jnp.float32, -lim1, lim1)
    b = jax.random.uniform(k_b, (FOUT,), jnp.float32, -lim1, lim1)
    lim2 = 1.0 / ((2 * FOUT) ** 0.5)
    a_w = jax.random.uniform(k_aw, (2 * FOUT,), jnp.float32, -lim2, lim2)
    a_b = jax.random.uniform(k_ab, (), jnp.float32, -lim2, lim2)

    # edge_index: ring graph (both directions) + self-loops -> dense adjacency
    # (equivalent to to_dense_adj(edge_index).squeeze(0)).
    src = jnp.concatenate([jnp.arange(N), jnp.arange(N), jnp.arange(N)])
    dst = jnp.concatenate([(jnp.arange(N) + 1) % N,
                           (jnp.arange(N) - 1) % N,
                           jnp.arange(N)])
    adj = jnp.zeros((N, N), jnp.float32).at[src, dst].add(1.0)

    out = gat_forward(h, W, b, a_w, a_b, adj, alpha=ALPHA)
    out = jax.block_until_ready(out)

    ref = gat_reference(h, W, b, a_w, a_b, adj, alpha=ALPHA)
    assert out.shape == (N, FOUT)
    # Tolerance accounts for the bf16 projection inputs, bf16 value matmul
    # (f32 accumulate) and the EUP approx reciprocal.
    assert jnp.allclose(out, ref, atol=3e-2, rtol=3e-2), "mismatch vs reference"

    print("KERNEL_OK")
</pallas_src>

<mosaic_0001>
module attributes {stable_mosaic.version = 11 : i64} {
  func.func @project_kernel(%arg0: i32, %arg1: memref<256x16xbf16, #tpu.memory_space<vmem>>, %arg2: memref<16x128xbf16, #tpu.memory_space<vmem>>, %arg3: memref<1x128xf32, #tpu.memory_space<vmem>>, %arg4: memref<1x128xf32, #tpu.memory_space<vmem>>, %arg5: memref<1x128xf32, #tpu.memory_space<vmem>>, %arg6: memref<1x1xf32, #tpu.memory_space<smem>>, %arg7: memref<256x128xbf16, #tpu.memory_space<vmem>>, %arg8: memref<256x1xf32, #tpu.memory_space<vmem>>, %arg9: memref<1x256xf32, #tpu.memory_space<vmem>>) attributes {dimension_semantics = [#tpu.dimension_semantics<parallel>], iteration_bounds = array<i64: 1>, scalar_prefetch = 0 : i64, scratch_operands = 0 : i64, tpu.core_type = #tpu.core_type<tc>, window_params = [{transform_indices = @transform_0, window_bounds = array<i64: 256, 16>}, {pipeline_mode = #tpu.pipeline_mode<synchronous>, transform_indices = @transform_1, window_bounds = array<i64: 16, 128>}, {pipeline_mode = #tpu.pipeline_mode<synchronous>, transform_indices = @transform_2, window_bounds = array<i64: 1, 128>}, {pipeline_mode = #tpu.pipeline_mode<synchronous>, transform_indices = @transform_3, window_bounds = array<i64: 1, 128>}, {pipeline_mode = #tpu.pipeline_mode<synchronous>, transform_indices = @transform_4, window_bounds = array<i64: 1, 128>}, {transform_indices = @transform_5, window_bounds = array<i64: 1, 1>}, {transform_indices = @transform_6, window_bounds = array<i64: 256, 128>}, {transform_indices = @transform_7, window_bounds = array<i64: 256, 1>}, {transform_indices = @transform_8, window_bounds = array<i64: 1, 256>}]} {
    %c0 = arith.constant 0 : index
    %c0_0 = arith.constant 0 : index
    %0 = vector.load %arg1[%c0, %c0_0] : memref<256x16xbf16, #tpu.memory_space<vmem>>, vector<256x16xbf16>
    %c0_1 = arith.constant 0 : index
    %c0_2 = arith.constant 0 : index
    %1 = vector.load %arg2[%c0_1, %c0_2] : memref<16x128xbf16, #tpu.memory_space<vmem>>, vector<16x128xbf16>
    %cst = arith.constant dense<0.000000e+00> : vector<256x128xf32>
    %2 = tpu.matmul %0, %1, %cst {dimension_numbers = #tpu.dot_dimension_numbers<[1], [0], [0], [1], [0, 0, 1, 1], [], []>} : vector<256x16xbf16>, vector<16x128xbf16>, vector<256x128xf32> -> vector<256x128xf32>
    %c0_3 = arith.constant 0 : index
    %c0_4 = arith.constant 0 : index
    %3 = vector.load %arg3[%c0_3, %c0_4] : memref<1x128xf32, #tpu.memory_space<vmem>>, vector<1x128xf32>
    %4 = vector.broadcast %3 : vector<1x128xf32> to vector<256x128xf32>
    %5 = arith.addf %2, %4 : vector<256x128xf32>
    %6 = arith.truncf %5 : vector<256x128xf32> to vector<256x128xbf16>
    %c0_5 = arith.constant 0 : index
    %c0_6 = arith.constant 0 : index
    %7 = vector.load %arg7[%c0_5, %c0_6] : memref<256x128xbf16, #tpu.memory_space<vmem>>, vector<256x128xbf16>
    tpu.vector_store %arg7[%c0_5, %c0_6], %6 {strides = array<i32>} : memref<256x128xbf16, #tpu.memory_space<vmem>>, vector<256x128xbf16>,
    %c0_7 = arith.constant 0 : index
    %c0_8 = arith.constant 0 : index
    %8 = vector.load %arg4[%c0_7, %c0_8] : memref<1x128xf32, #tpu.memory_space<vmem>>, vector<1x128xf32>
    %9 = vector.broadcast %8 : vector<1x128xf32> to vector<256x128xf32>
    %10 = arith.mulf %5, %9 : vector<256x128xf32>
    %cst_9 = arith.constant dense<0.000000e+00> : vector<256xf32>
    %11 = vector.multi_reduction <add>, %10, %cst_9 [1] : vector<256x128xf32> to vector<256xf32>
    %12 = vector.shape_cast %11 : vector<256xf32> to vector<256x1xf32>
    %c0_10 = arith.constant 0 : index
    %c0_11 = arith.constant 0 : index
    %13 = memref.load %arg6[%c0_10, %c0_11] : memref<1x1xf32, #tpu.memory_space<smem>>
    %14 = vector.broadcast %13 : f32 to vector<256x1xf32>
    %15 = arith.addf %12, %14 : vector<256x1xf32>
    %c0_12 = arith.constant 0 : index
    %c0_13 = arith.constant 0 : index
    %16 = vector.load %arg8[%c0_12, %c0_13] : memref<256x1xf32, #tpu.memory_space<vmem>>, vector<256x1xf32>
    tpu.vector_store %arg8[%c0_12, %c0_13], %15 {strides = array<i32>} : memref<256x1xf32, #tpu.memory_space<vmem>>, vector<256x1xf32>,
    %c0_14 = arith.constant 0 : index
    %c0_15 = arith.constant 0 : index
    %17 = vector.load %arg5[%c0_14, %c0_15] : memref<1x128xf32, #tpu.memory_space<vmem>>, vector<1x128xf32>
    %cst_16 = arith.constant dense<0.000000e+00> : vector<1x256xf32>
    %18 = tpu.matmul %17, %5, %cst_16 {dimension_numbers = #tpu.dot_dimension_numbers<[1], [1], [0], [0], [0, 0, 1, 0], [], []>} : vector<1x128xf32>, vector<256x128xf32>, vector<1x256xf32> -> vector<1x256xf32>
    %c0_17 = arith.constant 0 : index
    %c0_18 = arith.constant 0 : index
    %19 = vector.load %arg9[%c0_17, %c0_18] : memref<1x256xf32, #tpu.memory_space<vmem>>, vector<1x256xf32>
    tpu.vector_store %arg9[%c0_17, %c0_18], %18 {strides = array<i32>} : memref<1x256xf32, #tpu.memory_space<vmem>>, vector<1x256xf32>,
    return
  }
  func.func @transform_0(%arg0: i32) -> (i32, i32) {
    %c0_i32 = arith.constant 0 : i32
    %c0_i32_0 = arith.constant 0 : i32
    return %arg0, %c0_i32 : i32, i32
  }
  func.func @transform_1(%arg0: i32) -> (i32, i32) {
    %c0_i32 = arith.constant 0 : i32
    %c0_i32_0 = arith.constant 0 : i32
    %c0_i32_1 = arith.constant 0 : i32
    return %c0_i32, %c0_i32_0 : i32, i32
  }
  func.func @transform_2(%arg0: i32) -> (i32, i32) {
    %c0_i32 = arith.constant 0 : i32
    %c0_i32_0 = arith.constant 0 : i32
    %c0_i32_1 = arith.constant 0 : i32
    return %c0_i32, %c0_i32_0 : i32, i32
  }
  func.func @transform_3(%arg0: i32) -> (i32, i32) {
    %c0_i32 = arith.constant 0 : i32
    %c0_i32_0 = arith.constant 0 : i32
    %c0_i32_1 = arith.constant 0 : i32
    return %c0_i32, %c0_i32_0 : i32, i32
  }
  func.func @transform_4(%arg0: i32) -> (i32, i32) {
    %c0_i32 = arith.constant 0 : i32
    %c0_i32_0 = arith.constant 0 : i32
    %c0_i32_1 = arith.constant 0 : i32
    return %c0_i32, %c0_i32_0 : i32, i32
  }
  func.func @transform_5(%arg0: i32) -> (i32, i32) {
    %c0_i32 = arith.constant 0 : i32
    %c0_i32_0 = arith.constant 0 : i32
    %c0_i32_1 = arith.constant 0 : i32
    return %c0_i32, %c0_i32_0 : i32, i32
  }
  func.func @transform_6(%arg0: i32) -> (i32, i32) {
    %c0_i32 = arith.constant 0 : i32
    %c0_i32_0 = arith.constant 0 : i32
    return %arg0, %c0_i32 : i32, i32
  }
  func.func @transform_7(%arg0: i32) -> (i32, i32) {
    %c0_i32 = arith.constant 0 : i32
    %c0_i32_0 = arith.constant 0 : i32
    return %arg0, %c0_i32 : i32, i32
  }
  func.func @transform_8(%arg0: i32) -> (i32, i32) {
    %c0_i32 = arith.constant 0 : i32
    %c0_i32_0 = arith.constant 0 : i32
    return %c0_i32, %arg0 : i32, i32
  }
}

</mosaic_0001>

<llo_original>
// kernel: tpu_custom_call.1
$region0: #{tpu_custom_call.1}
  #allocation0 [shape = 'u32[]', space=smem, size = 0x4, offset = 0x4, fixed_abs, tag = 'smem constant byte address 0x4 - core index']
  #allocation1 [shape = 'u32[144,128]{1,0:T(1,128)}', space=vmem, size = 0x12000, scoped, tag = 'internal scratch']
  #allocation2 [shape = 'f32[1,1]{1,0:T(1,128)S(6)}', space=smem, size = 0x200, scoped, tag = 'scoped memory for tpu_custom_call.1']
  %s0 = inlined_call_operand.vmem [shape: bf16[256,16], index: 0, kind: input, shape index: {}]
  %s1 = inlined_call_operand.vmem [shape: bf16[16,128], index: 1, kind: input, shape index: {}]
  %s2 = inlined_call_operand.vmem [shape: f32[1,128], index: 2, kind: input, shape index: {}]
  %s3 = inlined_call_operand.vmem [shape: f32[1,128], index: 3, kind: input, shape index: {}]
  %s4 = inlined_call_operand.vmem [shape: f32[1,128], index: 4, kind: input, shape index: {}]
  %s5 = inlined_call_operand.<no memory space> [shape: f32[1,1], index: 5, kind: input, shape index: {}]
  %s6 = inlined_call_operand.hbm [shape: bf16[256,128], index: 6, kind: output, shape index: {0}]
  %s7 = inlined_call_operand.vmem [shape: f32[256,1], index: 7, kind: output, shape index: {1}]
  %s8 = inlined_call_operand.hbm [shape: f32[1,256], index: 8, kind: output, shape index: {2}]
  %9 = xla_tuple %s6, %s7, %s8
  %s10 = sld [smem:[#allocation0]]
  $region50: #{tpu_custom_call.1} parent=0
    _
  %s12 = ssub.s32 1, %s10
  %s13 = scalar_select 0, %s12, %s10
  %14 = sst [smem:[#allocation2]] %s5
  $region1: #{tpu_custom_call.1} parent=0
    #allocation3 [shape = 'u8[65536]{0}', space=vmem, size = 0x10000, scoped, tag = 'output window, operand 0, single buffered']
    #allocation4 [shape = 's32[1]{0}', space=sflag, size = 0x4, scoped, tag = 'scoped memory for tpu_custom_call.1']
    #allocation5 [shape = 'u8[1024]{0}', space=vmem, size = 0x400, scoped, tag = 'output window, operand 2, single buffered']
    #allocation6 [shape = 's32[1]{0}', space=sflag, size = 0x4, scoped, tag = 'scoped memory for tpu_custom_call.1']
    %15 = vsyncpa [#allocation4], 0
    %16 = vsyncpa [#allocation6], 0
    // Predicated region
    $region2: #{tpu_custom_call.1} parent=1 // pred_check
      _
    $region3: #{tpu_custom_call.1} parent=1 // pred_check_branch
      %18 = sbr.rel (0) target = $region5
    $region4: #{tpu_custom_call.1} parent=1 // pred_region
      _
    $region5: #{tpu_custom_call.1} parent=1 // pred_fallthru
      _
    // Predicated region
    $region6: #{tpu_custom_call.1} parent=1 // pred_check
      _
    $region7: #{tpu_custom_call.1} parent=1 // pred_check_branch
      %20 = sbr.rel (0) target = $region9
    $region8: #{tpu_custom_call.1} parent=1 // pred_region
      _
    $region9: #{tpu_custom_call.1} parent=1 // pred_fallthru
      _
    // Predicated region
    $region10: #{tpu_custom_call.1} parent=1 // pred_check
      _
    $region11: #{tpu_custom_call.1} parent=1 // pred_check_branch
      %22 = sbr.rel (0) target = $region13
    $region12: #{tpu_custom_call.1} parent=1 // pred_region
      _
    $region13: #{tpu_custom_call.1} parent=1 // pred_fallthru
      _
    // Predicated region
    $region14: #{tpu_custom_call.1} parent=1 // pred_check
      _
    $region15: #{tpu_custom_call.1} parent=1 // pred_check_branch
      %24 = sbr.rel (0) target = $region17
    $region16: #{tpu_custom_call.1} parent=1 // pred_region
      _
    $region17: #{tpu_custom_call.1} parent=1 // pred_fallthru
      _
    // Predicated region
    $region18: #{tpu_custom_call.1} parent=1 // pred_check
      _
    $region19: #{tpu_custom_call.1} parent=1 // pred_check_branch
      %26 = sbr.rel (0) target = $region21
    $region20: #{tpu_custom_call.1} parent=1 // pred_region
      _
    $region21: #{tpu_custom_call.1} parent=1 // pred_fallthru
      _
    // Predicated region
    $region22: #{tpu_custom_call.1} parent=1 // pred_check
      _
    $region23: #{tpu_custom_call.1} parent=1 // pred_check_branch
      %28 = sbr.rel (0) target = $region25
    $region24: #{tpu_custom_call.1} parent=1 // pred_region
      _
    $region25: #{tpu_custom_call.1} parent=1 // pred_fallthru
      _
    %v30 = vld [vmem:[%s0] sm:$0xf]
    %v31 = vld [vmem:[%s0 + $0x4] sm:$0xf]
    %v32 = vld [vmem:[%s0 + $0x8] sm:$0xf]
    %v33 = vld [vmem:[%s0 + $0xc] sm:$0xf]
    %v34 = vld [vmem:[%s0 + $0x10] sm:$0xf]
    %v35 = vld [vmem:[%s0 + $0x14] sm:$0xf]
    %v36 = vld [vmem:[%s0 + $0x18] sm:$0xf]
    %v37 = vld [vmem:[%s0 + $0x1c] sm:$0xf]
    %v38 = vld [vmem:[%s0 + $0x20] sm:$0xf]
    %v39 = vld [vmem:[%s0 + $0x24] sm:$0xf]
    %v40 = vld [vmem:[%s0 + $0x28] sm:$0xf]
    %v41 = vld [vmem:[%s0 + $0x2c] sm:$0xf]
    %v42 = vld [vmem:[%s0 + $0x30] sm:$0xf]
    %v43 = vld [vmem:[%s0 + $0x34] sm:$0xf]
    %v44 = vld [vmem:[%s0 + $0x38] sm:$0xf]
    %v45 = vld [vmem:[%s0 + $0x3c] sm:$0xf]
    %v46 = vld [vmem:[%s0 + $0x40] sm:$0xf]
    %v47 = vld [vmem:[%s0 + $0x44] sm:$0xf]
    %v48 = vld [vmem:[%s0 + $0x48] sm:$0xf]
    %v49 = vld [vmem:[%s0 + $0x4c] sm:$0xf]
    %v50 = vld [vmem:[%s0 + $0x50] sm:$0xf]
    %v51 = vld [vmem:[%s0 + $0x54] sm:$0xf]
    %v52 = vld [vmem:[%s0 + $0x58] sm:$0xf]
    %v53 = vld [vmem:[%s0 + $0x5c] sm:$0xf]
    %v54 = vld [vmem:[%s0 + $0x60] sm:$0xf]
    %v55 = vld [vmem:[%s0 + $0x64] sm:$0xf]
    %v56 = vld [vmem:[%s0 + $0x68] sm:$0xf]
    %v57 = vld [vmem:[%s0 + $0x6c] sm:$0xf]
    %v58 = vld [vmem:[%s0 + $0x70] sm:$0xf]
    %v59 = vld [vmem:[%s0 + $0x74] sm:$0xf]
    %v60 = vld [vmem:[%s0 + $0x78] sm:$0xf]
    %v61 = vld [vmem:[%s0 + $0x7c] sm:$0xf]
    %v62 = vld [vmem:[%s1] sm:$0xf]
    %v63 = vld [vmem:[%s1 + $0x4] sm:$0xf]
    %v64 = vld [vmem:[%s2] sm:$0x1]
    %v66 = vlaneseq
    %v67 = vshrl.u32 %v66, 7
    %v68 = vsub.s32 0, %v67
    %v69 = vrot.slane %v64, %v68
    %v103 = vunpack.c.l.b16 %v30
    %v104 = vunpack.c.l.b16 %v31
    %v105 = vunpack.c.l.b16 %v32
    %v106 = vunpack.c.l.b16 %v33
    %v107 = vunpack.c.l.b16 %v34
    %v108 = vunpack.c.l.b16 %v35
    %v109 = vunpack.c.l.b16 %v36
    %v110 = vunpack.c.l.b16 %v37
    %v111 = vunpack.c.l.b16 %v38
    %v112 = vunpack.c.l.b16 %v39
    %v113 = vunpack.c.l.b16 %v40
    %v114 = vunpack.c.l.b16 %v41
    %v115 = vunpack.c.l.b16 %v42
    %v116 = vunpack.c.l.b16 %v43
    %v117 = vunpack.c.l.b16 %v44
    %v118 = vunpack.c.l.b16 %v45
    %v119 = vunpack.c.l.b16 %v46
    %v120 = vunpack.c.l.b16 %v47
    %v121 = vunpack.c.l.b16 %v48
    %v122 = vunpack.c.l.b16 %v49
    %v123 = vunpack.c.l.b16 %v50
    %v124 = vunpack.c.l.b16 %v51
    %v125 = vunpack.c.l.b16 %v52
    %v126 = vunpack.c.l.b16 %v53
    %v127 = vunpack.c.l.b16 %v54
    %v128 = vunpack.c.l.b16 %v55
    %v129 = vunpack.c.l.b16 %v56
    %v130 = vunpack.c.l.b16 %v57
    %v131 = vunpack.c.l.b16 %v58
    %v132 = vunpack.c.l.b16 %v59
    %v133 = vunpack.c.l.b16 %v60
    %v134 = vunpack.c.l.b16 %v61
    %v135 = vpack.c.b16 %v104, %v103
    %v136 = vpack.c.b16 %v106, %v105
    %v137 = vpack.c.b16 %v108, %v107
    %v138 = vpack.c.b16 %v110, %v109
    %v139 = vpack.c.b16 %v112, %v111
    %v140 = vpack.c.b16 %v114, %v113
    %v141 = vpack.c.b16 %v116, %v115
    %v142 = vpack.c.b16 %v118, %v117
    %v143 = vpack.c.b16 %v120, %v119
    %v144 = vpack.c.b16 %v122, %v121
    %v145 = vpack.c.b16 %v124, %v123
    %v146 = vpack.c.b16 %v126, %v125
    %v147 = vpack.c.b16 %v128, %v127
    %v148 = vpack.c.b16 %v130, %v129
    %v149 = vpack.c.b16 %v132, %v131
    %v150 = vpack.c.b16 %v134, %v133
    %v153 = vunpack.c.l.b16 %v62
    %v154 = vunpack.c.l.b16 %v63
    %v155 = vpack.c.b16 %v154, %v153
    %vm157 = vcmask 130048
    %v159 = vsel %vm157, %v135, 0
    %v162 = vsel %vm157, %v136, 0
    %v165 = vsel %vm157, %v137, 0
    %v168 = vsel %vm157, %v138, 0
    %v171 = vsel %vm157, %v139, 0
    %v174 = vsel %vm157, %v140, 0
    %v177 = vsel %vm157, %v141, 0
    %v180 = vsel %vm157, %v142, 0
    %v183 = vsel %vm157, %v143, 0
    %v186 = vsel %vm157, %v144, 0
    %v189 = vsel %vm157, %v145, 0
    %v192 = vsel %vm157, %v146, 0
    %v195 = vsel %vm157, %v147, 0
    %v198 = vsel %vm157, %v148, 0
    %v201 = vsel %vm157, %v149, 0
    %v204 = vsel %vm157, %v150, 0
    %206 = vmatprep.subr.bf16.mxu0 0
    %207 = vmatpush1.bf16.msra.mxu0 0
    %208 = vmatprep.subr.bf16.mxu0 0
    %209 = vmatpush1.bf16.msra.mxu0 0
    %210 = vmatprep.subr.bf16.mxu0 0
    %211 = vmatpush1.bf16.msra.mxu0 0
    %212 = vmatprep.subr.bf16.mxu0 0
    %213 = vmatpush1.bf16.msra.mxu0 0
    %214 = vmatprep.subr.bf16.mxu0 0
    %215 = vmatpush1.bf16.msra.mxu0 0
    %216 = vmatprep.subr.bf16.mxu0 0
    %217 = vmatpush1.bf16.msra.mxu0 0
    %218 = vmatprep.subr.bf16.mxu0 0
    %219 = vmatpush1.bf16.msra.mxu0 0
    %220 = vmatprep.subr.bf16.mxu0 0
    %221 = vmatpush1.bf16.msra.mxu0 %v155
    %222 = vmatprep.subr.bf16.mxu0 0
    %223 = vmatpush2.bf16.msra.mxu0 0
    %224 = vmatprep.subr.bf16.mxu0 0
    %225 = vmatpush2.bf16.msra.mxu0 0
    %226 = vmatprep.subr.bf16.mxu0 0
    %227 = vmatpush2.bf16.msra.mxu0 0
    %228 = vmatprep.subr.bf16.mxu0 0
    %229 = vmatpush2.bf16.msra.mxu0 0
    %230 = vmatprep.subr.bf16.mxu0 0
    %231 = vmatpush2.bf16.msra.mxu0 0
    %232 = vmatprep.subr.bf16.mxu0 0
    %233 = vmatpush2.bf16.msra.mxu0 0
    %234 = vmatprep.subr.bf16.mxu0 0
    %235 = vmatpush2.bf16.msra.mxu0 0
    %236 = vmatprep.subr.bf16.mxu0 0
    %237 = vmatpush2.bf16.msra.mxu0 0
    %238 = vmatprep.mubr.bf16.mxu0 0
    %239 = vmatmul.mubr.bf16.gmra.mxu0 %v159
    %v240 = vpop.f32.mrf.mxu0
    %v241 = vadd.f32 %v69, %v240
    %v242 = vpop.f32.mrf.mxu0
    %v243 = vpop.f32.mrf.mxu0
    %v244 = vadd.f32 %v69, %v243
    %v245 = vpop.f32.mrf.mxu0
    %246 = vmatprep.mubr.bf16.mxu0 0
    %247 = vmatmul.mubr.bf16.gmra.mxu0 %v162
    %v248 = vpop.f32.mrf.mxu0
    %v249 = vadd.f32 %v69, %v248
    %v250 = vpop.f32.mrf.mxu0
    %v251 = vpop.f32.mrf.mxu0
    %v252 = vadd.f32 %v69, %v251
    %v253 = vpop.f32.mrf.mxu0
    %254 = vmatprep.mubr.bf16.mxu0 0
    %255 = vmatmul.mubr.bf16.gmra.mxu0 %v165
    %v256 = vpop.f32.mrf.mxu0
    %v257 = vadd.f32 %v69, %v256
    %v258 = vpop.f32.mrf.mxu0
    %v259 = vpop.f32.mrf.mxu0
    %v260 = vadd.f32 %v69, %v259
    %v261 = vpop.f32.mrf.mxu0
    %262 = vmatprep.mubr.bf16.mxu0 0
    %263 = vmatmul.mubr.bf16.gmra.mxu0 %v168
    %v264 = vpop.f32.mrf.mxu0
    %v265 = vadd.f32 %v69, %v264
    %v266 = vpop.f32.mrf.mxu0
    %v267 = vpop.f32.mrf.mxu0
    %v268 = vadd.f32 %v69, %v267
    %v269 = vpop.f32.mrf.mxu0
    %270 = vmatprep.mubr.bf16.mxu0 0
    %271 = vmatmul.mubr.bf16.gmra.mxu0 %v171
    %v272 = vpop.f32.mrf.mxu0
    %v273 = vadd.f32 %v69, %v272
    %v274 = vpop.f32.mrf.mxu0
    %v275 = vpop.f32.mrf.mxu0
    %v276 = vadd.f32 %v69, %v275
    %v277 = vpop.f32.mrf.mxu0
    %278 = vmatprep.mubr.bf16.mxu0 0
    %279 = vmatmul.mubr.bf16.gmra.mxu0 %v174
    %v280 = vpop.f32.mrf.mxu0
    %v281 = vadd.f32 %v69, %v280
    %v282 = vpop.f32.mrf.mxu0
    %v283 = vpop.f32.mrf.mxu0
    %v284 = vadd.f32 %v69, %v283
    %v285 = vpop.f32.mrf.mxu0
    %286 = vmatprep.mubr.bf16.mxu0 0
    %287 = vmatmul.mubr.bf16.gmra.mxu0 %v177
    %v288 = vpop.f32.mrf.mxu0
    %v289 = vadd.f32 %v69, %v288
    %v290 = vpop.f32.mrf.mxu0
    %v291 = vpop.f32.mrf.mxu0
    %v292 = vadd.f32 %v69, %v291
    %v293 = vpop.f32.mrf.mxu0
    %294 = vmatprep.mubr.bf16.mxu0 0
    %295 = vmatmul.mubr.bf16.gmra.mxu0 %v180
    %v296 = vpop.f32.mrf.mxu0
    %v297 = vadd.f32 %v69, %v296
    %v298 = vpop.f32.mrf.mxu0
    %v299 = vpop.f32.mrf.mxu0
    %v300 = vadd.f32 %v69, %v299
    %v301 = vpop.f32.mrf.mxu0
    %302 = vmatprep.mubr.bf16.mxu0 0
    %303 = vmatmul.mubr.bf16.gmra.mxu0 %v183
    %v304 = vpop.f32.mrf.mxu0
    %v305 = vadd.f32 %v69, %v304
    %v306 = vpop.f32.mrf.mxu0
    %v307 = vpop.f32.mrf.mxu0
    %v308 = vadd.f32 %v69, %v307
    %v309 = vpop.f32.mrf.mxu0
    %310 = vmatprep.mubr.bf16.mxu0 0
    %311 = vmatmul.mubr.bf16.gmra.mxu0 %v186
    %v312 = vpop.f32.mrf.mxu0
    %v313 = vadd.f32 %v69, %v312
    %v314 = vpop.f32.mrf.mxu0
    %v315 = vpop.f32.mrf.mxu0
    %v316 = vadd.f32 %v69, %v315
    %v317 = vpop.f32.mrf.mxu0
    %318 = vmatprep.mubr.bf16.mxu0 0
    %319 = vmatmul.mubr.bf16.gmra.mxu0 %v189
    %v320 = vpop.f32.mrf.mxu0
    %v321 = vadd.f32 %v69, %v320
    %v322 = vpop.f32.mrf.mxu0
    %v323 = vpop.f32.mrf.mxu0
    %v324 = vadd.f32 %v69, %v323
    %v325 = vpop.f32.mrf.mxu0
    %326 = vmatprep.mubr.bf16.mxu0 0
    %327 = vmatmul.mubr.bf16.gmra.mxu0 %v192
    %v328 = vpop.f32.mrf.mxu0
    %v329 = vadd.f32 %v69, %v328
    %v330 = vpop.f32.mrf.mxu0
    %v331 = vpop.f32.mrf.mxu0
    %v332 = vadd.f32 %v69, %v331
    %v333 = vpop.f32.mrf.mxu0
    %334 = vmatprep.mubr.bf16.mxu0 0
    %335 = vmatmul.mubr.bf16.gmra.mxu0 %v195
    %v336 = vpop.f32.mrf.mxu0
    %v337 = vadd.f32 %v69, %v336
    %v338 = vpop.f32.mrf.mxu0
    %v339 = vpop.f32.mrf.mxu0
    %v340 = vadd.f32 %v69, %v339
    %v341 = vpop.f32.mrf.mxu0
    %342 = vmatprep.mubr.bf16.mxu0 0
    %343 = vmatmul.mubr.bf16.gmra.mxu0 %v198
    %v344 = vpop.f32.mrf.mxu0
    %v345 = vadd.f32 %v69, %v344
    %v346 = vpop.f32.mrf.mxu0
    %v347 = vpop.f32.mrf.mxu0
    %v348 = vadd.f32 %v69, %v347
    %v349 = vpop.f32.mrf.mxu0
    %350 = vmatprep.mubr.bf16.mxu0 0
    %351 = vmatmul.mubr.bf16.gmra.mxu0 %v201
    %v352 = vpop.f32.mrf.mxu0
    %v353 = vadd.f32 %v69, %v352
    %v354 = vpop.f32.mrf.mxu0
    %v355 = vpop.f32.mrf.mxu0
    %v356 = vadd.f32 %v69, %v355
    %v357 = vpop.f32.mrf.mxu0
    %358 = vmatprep.mubr.bf16.mxu0 0
    %359 = vmatmul.mubr.bf16.gmra.mxu0 %v204
    %v360 = vpop.f32.mrf.mxu0
    %v361 = vadd.f32 %v69, %v360
    %v362 = vpop.f32.mrf.mxu0
    %v363 = vpop.f32.mrf.mxu0
    %v364 = vadd.f32 %v69, %v363
    %v365 = vpop.f32.mrf.mxu0
    %366 = vdwg.mxu0
    %v367 = vpack.c.bf16 %v244, %v241
    %v368 = vpack.c.bf16 %v252, %v249
    %v369 = vpack.c.bf16 %v260, %v257
    %v370 = vpack.c.bf16 %v268, %v265
    %v371 = vpack.c.bf16 %v276, %v273
    %v372 = vpack.c.bf16 %v284, %v281
    %v373 = vpack.c.bf16 %v292, %v289
    %v374 = vpack.c.bf16 %v300, %v297
    %v375 = vpack.c.bf16 %v308, %v305
    %v376 = vpack.c.bf16 %v316, %v313
    %v377 = vpack.c.bf16 %v324, %v321
    %v378 = vpack.c.bf16 %v332, %v329
    %v379 = vpack.c.bf16 %v340, %v337
    %v380 = vpack.c.bf16 %v348, %v345
    %v381 = vpack.c.bf16 %v356, %v353
    %v382 = vpack.c.bf16 %v364, %v361
    %v399 = vunpack.c.l.b16 %v367
    %v400 = vunpack.c.h.b16 %v367
    %v401 = vunpack.c.l.b16 %v368
    %v402 = vunpack.c.h.b16 %v368
    %v403 = vunpack.c.l.b16 %v369
    %v404 = vunpack.c.h.b16 %v369
    %v405 = vunpack.c.l.b16 %v370
    %v406 = vunpack.c.h.b16 %v370
    %v407 = vunpack.c.l.b16 %v371
    %v408 = vunpack.c.h.b16 %v371
    %v409 = vunpack.c.l.b16 %v372
    %v410 = vunpack.c.h.b16 %v372
    %v411 = vunpack.c.l.b16 %v373
    %v412 = vunpack.c.h.b16 %v373
    %v413 = vunpack.c.l.b16 %v374
    %v414 = vunpack.c.h.b16 %v374
    %v415 = vunpack.c.l.b16 %v375
    %v416 = vunpack.c.h.b16 %v375
    %v417 = vunpack.c.l.b16 %v376
    %v418 = vunpack.c.h.b16 %v376
    %v419 = vunpack.c.l.b16 %v377
    %v420 = vunpack.c.h.b16 %v377
    %v421 = vunpack.c.l.b16 %v378
    %v422 = vunpack.c.h.b16 %v378
    %v423 = vunpack.c.l.b16 %v379
    %v424 = vunpack.c.h.b16 %v379
    %v425 = vunpack.c.l.b16 %v380
    %v426 = vunpack.c.h.b16 %v380
    %v427 = vunpack.c.l.b16 %v381
    %v428 = vunpack.c.h.b16 %v381
    %v429 = vunpack.c.l.b16 %v382
    %v430 = vunpack.c.h.b16 %v382
    %v431 = vpack.c.b16 %v399, %v399
    %v432 = vpack.c.b16 %v400, %v400
    %v433 = vpack.c.b16 %v401, %v401
    %v434 = vpack.c.b16 %v402, %v402
    %v435 = vpack.c.b16 %v403, %v403
    %v436 = vpack.c.b16 %v404, %v404
    %v437 = vpack.c.b16 %v405, %v405
    %v438 = vpack.c.b16 %v406, %v406
    %v439 = vpack.c.b16 %v407, %v407
    %v440 = vpack.c.b16 %v408, %v408
    %v441 = vpack.c.b16 %v409, %v409
    %v442 = vpack.c.b16 %v410, %v410
    %v443 = vpack.c.b16 %v411, %v411
    %v444 = vpack.c.b16 %v412, %v412
    %v445 = vpack.c.b16 %v413, %v413
    %v446 = vpack.c.b16 %v414, %v414
    %v447 = vpack.c.b16 %v415, %v415
    %v448 = vpack.c.b16 %v416, %v416
    %v449 = vpack.c.b16 %v417, %v417
    %v450 = vpack.c.b16 %v418, %v418
    %v451 = vpack.c.b16 %v419, %v419
    %v452 = vpack.c.b16 %v420, %v420
    %v453 = vpack.c.b16 %v421, %v421
    %v454 = vpack.c.b16 %v422, %v422
    %v455 = vpack.c.b16 %v423, %v423
    %v456 = vpack.c.b16 %v424, %v424
    %v457 = vpack.c.b16 %v425, %v425
    %v458 = vpack.c.b16 %v426, %v426
    %v459 = vpack.c.b16 %v427, %v427
    %v460 = vpack.c.b16 %v428, %v428
    %v461 = vpack.c.b16 %v429, %v429
    %v462 = vpack.c.b16 %v430, %v430
    %495 = vst [vmem:[#allocation3] sm:$0xf] %v431
    %496 = vst [vmem:[#allocation3 + $0x4] sm:$0xf] %v432
    %497 = vst [vmem:[#allocation3 + $0x8] sm:$0xf] %v433
    %498 = vst [vmem:[#allocation3 + $0xc] sm:$0xf] %v434
    %499 = vst [vmem:[#allocation3 + $0x10] sm:$0xf] %v435
    %500 = vst [vmem:[#allocation3 + $0x14] sm:$0xf] %v436
    %501 = vst [vmem:[#allocation3 + $0x18] sm:$0xf] %v437
    %502 = vst [vmem:[#allocation3 + $0x1c] sm:$0xf] %v438
    %503 = vst [vmem:[#allocation3 + $0x20] sm:$0xf] %v439
    %504 = vst [vmem:[#allocation3 + $0x24] sm:$0xf] %v440
    %505 = vst [vmem:[#allocation3 + $0x28] sm:$0xf] %v441
    %506 = vst [vmem:[#allocation3 + $0x2c] sm:$0xf] %v442
    %507 = vst [vmem:[#allocation3 + $0x30] sm:$0xf] %v443
    %508 = vst [vmem:[#allocation3 + $0x34] sm:$0xf] %v444
    %509 = vst [vmem:[#allocation3 + $0x38] sm:$0xf] %v445
    %510 = vst [vmem:[#allocation3 + $0x3c] sm:$0xf] %v446
    %511 = vst [vmem:[#allocation3 + $0x40] sm:$0xf] %v447
    %512 = vst [vmem:[#allocation3 + $0x44] sm:$0xf] %v448
    %513 = vst [vmem:[#allocation3 + $0x48] sm:$0xf] %v449
    %514 = vst [vmem:[#allocation3 + $0x4c] sm:$0xf] %v450
    %515 = vst [vmem:[#allocation3 + $0x50] sm:$0xf] %v451
    %516 = vst [vmem:[#allocation3 + $0x54] sm:$0xf] %v452
    %517 = vst [vmem:[#allocation3 + $0x58] sm:$0xf] %v453
    %518 = vst [vmem:[#allocation3 + $0x5c] sm:$0xf] %v454
    %519 = vst [vmem:[#allocation3 + $0x60] sm:$0xf] %v455
    %520 = vst [vmem:[#allocation3 + $0x64] sm:$0xf] %v456
    %521 = vst [vmem:[#allocation3 + $0x68] sm:$0xf] %v457
    %522 = vst [vmem:[#allocation3 + $0x6c] sm:$0xf] %v458
    %523 = vst [vmem:[#allocation3 + $0x70] sm:$0xf] %v459
    %524 = vst [vmem:[#allocation3 + $0x74] sm:$0xf] %v460
    %525 = vst [vmem:[#allocation3 + $0x78] sm:$0xf] %v461
    %526 = vst [vmem:[#allocation3 + $0x7c] sm:$0xf] %v462
    %v527 = vld [vmem:[%s3] sm:$0x1]
    %v529 = vlaneseq
    %v530 = vshrl.u32 %v529, 7
    %v531 = vsub.s32 0, %v530
    %v532 = vrot.slane %v527, %v531
    %v534 = vmul.f32 %v241, %v532
    %v535 = vmul.f32 %v244, %v532
    %v536 = vmul.f32 %v249, %v532
    %v537 = vmul.f32 %v252, %v532
    %v538 = vmul.f32 %v257, %v532
    %v539 = vmul.f32 %v260, %v532
    %v540 = vmul.f32 %v265, %v532
    %v541 = vmul.f32 %v268, %v532
    %v542 = vmul.f32 %v273, %v532
    %v543 = vmul.f32 %v276, %v532
    %v544 = vmul.f32 %v281, %v532
    %v545 = vmul.f32 %v284, %v532
    %v546 = vmul.f32 %v289, %v532
    %v547 = vmul.f32 %v292, %v532
    %v548 = vmul.f32 %v297, %v532
    %v549 = vmul.f32 %v300, %v532
    %v550 = vmul.f32 %v305, %v532
    %v551 = vmul.f32 %v308, %v532
    %v552 = vmul.f32 %v313, %v532
    %v553 = vmul.f32 %v316, %v532
    %v554 = vmul.f32 %v321, %v532
    %v555 = vmul.f32 %v324, %v532
    %v556 = vmul.f32 %v329, %v532
    %v557 = vmul.f32 %v332, %v532
    %v558 = vmul.f32 %v337, %v532
    %v559 = vmul.f32 %v340, %v532
    %v560 = vmul.f32 %v345, %v532
    %v561 = vmul.f32 %v348, %v532
    %v562 = vmul.f32 %v353, %v532
    %v563 = vmul.f32 %v356, %v532
    %v564 = vmul.f32 %v361, %v532
    %v565 = vmul.f32 %v364, %v532
    %566 = vadd.xlane.f32.xlu0 %v534
    %v567 = vpop.xlane.xlu0 %566
    %568 = vadd.xlane.f32.xlu0 %v535
    %v569 = vpop.xlane.xlu0 %568
    %570 = vadd.xlane.f32.xlu0 %v536
    %v571 = vpop.xlane.xlu0 %570
    %572 = vadd.xlane.f32.xlu0 %v537
    %v573 = vpop.xlane.xlu0 %572
    %574 = vadd.xlane.f32.xlu0 %v538
    %v575 = vpop.xlane.xlu0 %574
    %576 = vadd.xlane.f32.xlu0 %v539
    %v577 = vpop.xlane.xlu0 %576
    %578 = vadd.xlane.f32.xlu0 %v540
    %v579 = vpop.xlane.xlu0 %578
    %580 = vadd.xlane.f32.xlu0 %v541
    %v581 = vpop.xlane.xlu0 %580
    %582 = vadd.xlane.f32.xlu0 %v542
    %v583 = vpop.xlane.xlu0 %582
    %584 = vadd.xlane.f32.xlu0 %v543
    %v585 = vpop.xlane.xlu0 %584
    %586 = vadd.xlane.f32.xlu0 %v544
    %v587 = vpop.xlane.xlu0 %586
    %588 = vadd.xlane.f32.xlu0 %v545
    %v589 = vpop.xlane.xlu0 %588
    %590 = vadd.xlane.f32.xlu0 %v546
    %v591 = vpop.xlane.xlu0 %590
    %592 = vadd.xlane.f32.xlu0 %v547
    %v593 = vpop.xlane.xlu0 %592
    %594 = vadd.xlane.f32.xlu0 %v548
    %v595 = vpop.xlane.xlu0 %594
    %596 = vadd.xlane.f32.xlu0 %v549
    %v597 = vpop.xlane.xlu0 %596
    %598 = vadd.xlane.f32.xlu0 %v550
    %v599 = vpop.xlane.xlu0 %598
    %600 = vadd.xlane.f32.xlu0 %v551
    %v601 = vpop.xlane.xlu0 %600
    %602 = vadd.xlane.f32.xlu0 %v552
    %v603 = vpop.xlane.xlu0 %602
    %604 = vadd.xlane.f32.xlu0 %v553
    %v605 = vpop.xlane.xlu0 %604
    %606 = vadd.xlane.f32.xlu0 %v554
    %v607 = vpop.xlane.xlu0 %606
    %608 = vadd.xlane.f32.xlu0 %v555
    %v609 = vpop.xlane.xlu0 %608
    %610 = vadd.xlane.f32.xlu0 %v556
    %v611 = vpop.xlane.xlu0 %610
    %612 = vadd.xlane.f32.xlu0 %v557
    %v613 = vpop.xlane.xlu0 %612
    %614 = vadd.xlane.f32.xlu0 %v558
    %v615 = vpop.xlane.xlu0 %614
    %616 = vadd.xlane.f32.xlu0 %v559
    %v617 = vpop.xlane.xlu0 %616
    %618 = vadd.xlane.f32.xlu0 %v560
    %v619 = vpop.xlane.xlu0 %618
    %620 = vadd.xlane.f32.xlu0 %v561
    %v621 = vpop.xlane.xlu0 %620
    %622 = vadd.xlane.f32.xlu0 %v562
    %v623 = vpop.xlane.xlu0 %622
    %624 = vadd.xlane.f32.xlu0 %v563
    %v625 = vpop.xlane.xlu0 %624
    %626 = vadd.xlane.f32.xlu0 %v564
    %v627 = vpop.xlane.xlu0 %626
    %628 = vadd.xlane.f32.xlu0 %v565
    %v629 = vpop.xlane.xlu0 %628
    %s630 = sld [smem:[#allocation2]]
    %v631 = vstv %s630
    %v632 = vadd.f32 %v567, %v631
    %v633 = vadd.f32 %v569, %v631
    %v634 = vadd.f32 %v571, %v631
    %v635 = vadd.f32 %v573, %v631
    %v636 = vadd.f32 %v575, %v631
    %v637 = vadd.f32 %v577, %v631
    %v638 = vadd.f32 %v579, %v631
    %v639 = vadd.f32 %v581, %v631
    %v640 = vadd.f32 %v583, %v631
    %v641 = vadd.f32 %v585, %v631
    %v642 = vadd.f32 %v587, %v631
    %v643 = vadd.f32 %v589, %v631
    %v644 = vadd.f32 %v591, %v631
    %v645 = vadd.f32 %v593, %v631
    %v646 = vadd.f32 %v595, %v631
    %v647 = vadd.f32 %v597, %v631
    %v648 = vadd.f32 %v599, %v631
    %v649 = vadd.f32 %v601, %v631
    %v650 = vadd.f32 %v603, %v631
    %v651 = vadd.f32 %v605, %v631
    %v652 = vadd.f32 %v607, %v631
    %v653 = vadd.f32 %v609, %v631
    %v654 = vadd.f32 %v611, %v631
    %v655 = vadd.f32 %v613, %v631
    %v656 = vadd.f32 %v615, %v631
    %v657 = vadd.f32 %v617, %v631
    %v658 = vadd.f32 %v619, %v631
    %v659 = vadd.f32 %v621, %v631
    %v660 = vadd.f32 %v623, %v631
    %v661 = vadd.f32 %v625, %v631
    %v662 = vadd.f32 %v627, %v631
    %v663 = vadd.f32 %v629, %v631
    %vm664 = vcmask 7168
    %665 = vst.msk [vmem:[%s7] sm:$0xff] %vm664, %v632
    %666 = vst.msk [vmem:[%s7 + $0x8] sm:$0xff] %vm664, %v633
    %667 = vst.msk [vmem:[%s7 + $0x10] sm:$0xff] %vm664, %v634
    %668 = vst.msk [vmem:[%s7 + $0x18] sm:$0xff] %vm664, %v635
    %669 = vst.msk [vmem:[%s7 + $0x20] sm:$0xff] %vm664, %v636
    %670 = vst.msk [vmem:[%s7 + $0x28] sm:$0xff] %vm664, %v637
    %671 = vst.msk [vmem:[%s7 + $0x30] sm:$0xff] %vm664, %v638
    %672 = vst.msk [vmem:[%s7 + $0x38] sm:$0xff] %vm664, %v639
    %673 = vst.msk [vmem:[%s7 + $0x40] sm:$0xff] %vm664, %v640
    %674 = vst.msk [vmem:[%s7 + $0x48] sm:$0xff] %vm664, %v641
    %675 = vst.msk [vmem:[%s7 + $0x50] sm:$0xff] %vm664, %v642
    %676 = vst.msk [vmem:[%s7 + $0x58] sm:$0xff] %vm664, %v643
    %677 = vst.msk [vmem:[%s7 + $0x60] sm:$0xff] %vm664, %v644
    %678 = vst.msk [vmem:[%s7 + $0x68] sm:$0xff] %vm664, %v645
    %679 = vst.msk [vmem:[%s7 + $0x70] sm:$0xff] %vm664, %v646
    %680 = vst.msk [vmem:[%s7 + $0x78] sm:$0xff] %vm664, %v647
    %681 = vst.msk [vmem:[%s7 + $0x80] sm:$0xff] %vm664, %v648
    %682 = vst.msk [vmem:[%s7 + $0x88] sm:$0xff] %vm664, %v649
    %683 = vst.msk [vmem:[%s7 + $0x90] sm:$0xff] %vm664, %v650
    %684 = vst.msk [vmem:[%s7 + $0x98] sm:$0xff] %vm664, %v651
    %685 = vst.msk [vmem:[%s7 + $0xa0] sm:$0xff] %vm664, %v652
    %686 = vst.msk [vmem:[%s7 + $0xa8] sm:$0xff] %vm664, %v653
    %687 = vst.msk [vmem:[%s7 + $0xb0] sm:$0xff] %vm664, %v654
    %688 = vst.msk [vmem:[%s7 + $0xb8] sm:$0xff] %vm664, %v655
    %689 = vst.msk [vmem:[%s7 + $0xc0] sm:$0xff] %vm664, %v656
    %690 = vst.msk [vmem:[%s7 + $0xc8] sm:$0xff] %vm664, %v657
    %691 = vst.msk [vmem:[%s7 + $0xd0] sm:$0xff] %vm664, %v658
    %692 = vst.msk [vmem:[%s7 + $0xd8] sm:$0xff] %vm664, %v659
    %693 = vst.msk [vmem:[%s7 + $0xe0] sm:$0xff] %vm664, %v660
    %694 = vst.msk [vmem:[%s7 + $0xe8] sm:$0xff] %vm664, %v661
    %695 = vst.msk [vmem:[%s7 + $0xf0] sm:$0xff] %vm664, %v662
    %696 = vst.msk [vmem:[%s7 + $0xf8] sm:$0xff] %vm664, %v663
    %v697 = vld [vmem:[%s4] sm:$0x1]
    %698 = vmatprep.subr.mxu0 0.0
    %699 = vmatpush1.xpose.msra.mxu0 %v300
    %700 = vmatprep.subr.mxu0 0.0
    %701 = vmatpush1.xpose.msra.mxu0 %v297
    %702 = vmatprep.subr.mxu0 0.0
    %703 = vmatpush1.xpose.msra.mxu0 %v292
    %704 = vmatprep.subr.mxu0 0.0
    %705 = vmatpush1.xpose.msra.mxu0 %v289
    %706 = vmatprep.subr.mxu0 0.0
    %707 = vmatpush1.xpose.msra.mxu0 %v284
    %708 = vmatprep.subr.mxu0 0.0
    %709 = vmatpush1.xpose.msra.mxu0 %v281
    %710 = vmatprep.subr.mxu0 0.0
    %711 = vmatpush1.xpose.msra.mxu0 %v276
    %712 = vmatprep.subr.mxu0 0.0
    %713 = vmatpush1.xpose.msra.mxu0 %v273
    %714 = vmatprep.subr.mxu0 0.0
    %715 = vmatpush1.xpose.msra.mxu0 %v268
    %716 = vmatprep.subr.mxu0 0.0
    %717 = vmatpush1.xpose.msra.mxu0 %v265
    %718 = vmatprep.subr.mxu0 0.0
    %719 = vmatpush1.xpose.msra.mxu0 %v260
    %720 = vmatprep.subr.mxu0 0.0
    %721 = vmatpush1.xpose.msra.mxu0 %v257
    %722 = vmatprep.subr.mxu0 0.0
    %723 = vmatpush1.xpose.msra.mxu0 %v252
    %724 = vmatprep.subr.mxu0 0.0
    %725 = vmatpush1.xpose.msra.mxu0 %v249
    %726 = vmatprep.subr.mxu0 0.0
    %727 = vmatpush1.xpose.msra.mxu0 %v244
    %728 = vmatprep.subr.mxu0 0.0
    %729 = vmatpush1.xpose.msra.mxu0 %v241
    %730 = vmatprep.subr.mxu0 0.0
    %731 = vmatpush2.xpose.msra.mxu0 %v364
    %732 = vmatprep.subr.mxu0 0.0
    %733 = vmatpush2.xpose.msra.mxu0 %v361
    %734 = vmatprep.subr.mxu0 0.0
    %735 = vmatpush2.xpose.msra.mxu0 %v356
    %736 = vmatprep.subr.mxu0 0.0
    %737 = vmatpush2.xpose.msra.mxu0 %v353
    %738 = vmatprep.subr.mxu0 0.0
    %739 = vmatpush2.xpose.msra.mxu0 %v348
    %740 = vmatprep.subr.mxu0 0.0
    %741 = vmatpush2.xpose.msra.mxu0 %v345
    %742 = vmatprep.subr.mxu0 0.0
    %743 = vmatpush2.xpose.msra.mxu0 %v340
    %744 = vmatprep.subr.mxu0 0.0
    %745 = vmatpush2.xpose.msra.mxu0 %v337
    %746 = vmatprep.subr.mxu0 0.0
    %747 = vmatpush2.xpose.msra.mxu0 %v332
    %748 = vmatprep.subr.mxu0 0.0
    %749 = vmatpush2.xpose.msra.mxu0 %v329
    %750 = vmatprep.subr.mxu0 0.0
    %751 = vmatpush2.xpose.msra.mxu0 %v324
    %752 = vmatprep.subr.mxu0 0.0
    %753 = vmatpush2.xpose.msra.mxu0 %v321
    %754 = vmatprep.subr.mxu0 0.0
    %755 = vmatpush2.xpose.msra.mxu0 %v316
    %756 = vmatprep.subr.mxu0 0.0
    %757 = vmatpush2.xpose.msra.mxu0 %v313
    %758 = vmatprep.subr.mxu0 0.0
    %759 = vmatpush2.xpose.msra.mxu0 %v308
    %760 = vmatprep.subr.mxu0 0.0
    %761 = vmatpush2.xpose.msra.mxu0 %v305
    %762 = vmatprep.mubr.f32.mxu0 0.0
    %763 = vmatmul.mubr.f32.gmra.mxu0 %v697
    %v764 = vpop.f32.mrf.mxu0
    %v765 = vadd.f32 0.0, %v764
    %v766 = vpop.f32.mrf.mxu0
    %v767 = vadd.f32 0.0, %v766
    %768 = vdwg.mxu0
    %v771 = vcombine.low %v765, %v767
    %v773 = vunpack.c.l.s4 1966171168
    %v774 = vunpack.c.0.s8 %v773
    %v775 = vlaneseq
    %v776 = vshrl.u32 %v775, 7
    %v777 = vsub.s32 %v774, %v776
    %v778 = vrot.slane %v771, %v777
    %v780 = vunpack.c.l.s4 1966171168
    %v781 = vunpack.c.0.s8 %v780
    %v782 = vlaneseq
    %v783 = vshrl.u32 %v782, 7
    %v784 = vsub.s32 %v781, %v783
    %v785 = vrot.slane %v778, %v784
    %v787 = vlaneseq
    %vm788 = vcmp.ge.s32.totalorder %v787, 0
    %vm789 = vcmp.lt.s32.totalorder %v787, 256
    %vm790 = vmand %vm788, %vm789
    %791 = vst.msk [vmem:[#allocation5] sm:$0x3] %vm790, %v785
    // Predicated region
    $region26: #{tpu_custom_call.1} parent=1 // pred_check
      _
    $region27: #{tpu_custom_call.1} parent=1 // pred_check_branch
      %793 = sbr.rel (0) target = $region29
    $region28: #{tpu_custom_call.1} parent=1 // pred_region
      %s795 = ssub.s32 2048, 2048
      %796 = vsyncadd [#allocation4], %s795
      %s797 = sshll.u32 [#allocation3], 4
      %s798 = int_to_ptr.vmem [resolvable:$true] %s797
      %803 = dma.vmem_to_hbm [thread:$0]  %s798, 2048, %s6, [#allocation4], 64, 64, 4
    $region29: #{tpu_custom_call.1} parent=1 // pred_fallthru
      _
    // Predicated region
    $region30: #{tpu_custom_call.1} parent=1 // pred_check
      _
    $region31: #{tpu_custom_call.1} parent=1 // pred_check_branch
      %805 = sbr.rel (0) target = $region33
    $region32: #{tpu_custom_call.1} parent=1 // pred_region
      _
    $region33: #{tpu_custom_call.1} parent=1 // pred_fallthru
      _
    // Predicated region
    $region34: #{tpu_custom_call.1} parent=1 // pred_check
      _
    $region35: #{tpu_custom_call.1} parent=1 // pred_check_branch
      %807 = sbr.rel (0) target = $region37
    $region36: #{tpu_custom_call.1} parent=1 // pred_region
      %s809 = ssub.s32 32, 32
      %810 = vsyncadd [#allocation6], %s809
      %s812 = sshll.u32 [#allocation5], 4
      %s813 = int_to_ptr.vmem [resolvable:$true] %s812
      %815 = dma.vmem_to_hbm [thread:$0]  %s813, 32, %s8, [#allocation6]
    $region37: #{tpu_custom_call.1} parent=1 // pred_fallthru
      _
    // Predicated region
    $region38: #{tpu_custom_call.1} parent=1 // pred_check
      _
    $region39: #{tpu_custom_call.1} parent=1 // pred_check_branch
      %817 = sbr.rel (0) target = $region41
    $region40: #{tpu_custom_call.1} parent=1 // pred_region
      %818 = dma.done [#allocation4], 2048
    $region41: #{tpu_custom_call.1} parent=1 // pred_fallthru
      _
    // Predicated region
    $region42: #{tpu_custom_call.1} parent=1 // pred_check
      _
    $region43: #{tpu_custom_call.1} parent=1 // pred_check_branch
      %820 = sbr.rel (0) target = $region45
    $region44: #{tpu_custom_call.1} parent=1 // pred_region
      _
    $region45: #{tpu_custom_call.1} parent=1 // pred_fallthru
      _
    // Predicated region
    $region46: #{tpu_custom_call.1} parent=1 // pred_check
      _
    $region47: #{tpu_custom_call.1} parent=1 // pred_check_branch
      %822 = sbr.rel (0) target = $region49
    $region48: #{tpu_custom_call.1} parent=1 // pred_region
      %823 = dma.done [#allocation6], 32
    $region49: #{tpu_custom_call.1} parent=1 // pred_fallthru
      _
    %824 = vsyncpa [#allocation4], 1
    %825 = vsyncpa [#allocation6], 1

</llo_original>
